<compile_context>
chip_gen: v7x
topology: tpu7x:2x2x1
jax: 0.10.0
libtpu: 0.0.40
codegen_flags: <defaults>
</compile_context>

<pallas_src>
import functools

import jax
import jax.numpy as jnp
from jax.experimental import pallas as pl
from jax.experimental.pallas import tpu as pltpu


def _loss_reduce_kernel(x_ref, lbl_ref, out_ref, *, hw, tp):
    t = pl.program_id(1)

    x = x_ref[...].astype(jnp.float32)        # (C, TP): classes on sublanes, pixels on lanes
    lbl = lbl_ref[...].astype(jnp.int32)      # (1, TP)
    c = x.shape[0]

    ragged = (hw % tp) != 0                   # compile-time constant
    if ragged:
        pix = t * tp + jax.lax.broadcasted_iota(jnp.int32, (1, tp), 1)
        in_bounds = pix < hw
        x = jnp.where(in_bounds, x, 0.0)
        lbl = jnp.where(in_bounds, lbl, -2)   # -2 = padding pixel
        rf = in_bounds.astype(jnp.float32)    # "real" (non-padding) pixel mask

    valid = lbl >= 0                          # labelled, non-ignored pixel
    vf = valid.astype(jnp.float32)            # (1, TP)
    clamped = jnp.where(valid, lbl, 0)

    # class-axis softmax / log-softmax (cross-sublane reductions; lanes stay dense)
    mx = jnp.max(x, axis=0, keepdims=True)                 # (1, TP)
    z = x - mx                                             # (C, TP)
    ez = jnp.exp(z)
    se = jnp.sum(ez, axis=0, keepdims=True)                # (1, TP)
    inv_se = pl.reciprocal(se, approx=False)               # (1, TP) exact (feeds dice)
    p = ez * inv_se                                        # (C, TP) softmax
    log_se = jnp.log(se)                                   # (1, TP)

    cls = jax.lax.broadcasted_iota(jnp.int32, (c, tp), 0)
    onehot = (cls == clamped).astype(jnp.float32)          # (C, TP)

    z_at = jnp.sum(onehot * z, axis=0, keepdims=True)      # logits[label] - max
    ce = log_se - z_at                                     # -log softmax[label]
    p_at = jnp.exp(z_at - log_se)                          # softmax[label] = exp(-ce)

    # background channel (class 0) terms; sigmoid derived from exp(-|x|)
    logit0 = x[0:1, :]                                     # (1, TP)
    t_bg = (lbl > 0).astype(jnp.float32)
    e0 = jnp.exp(-jnp.abs(logit0))
    sig = jnp.where(logit0 >= 0.0, 1.0, e0) * pl.reciprocal(1.0 + e0, approx=False)
    bce = jnp.maximum(logit0, 0.0) - logit0 * t_bg + jnp.log1p(e0)

    mod = 1.0 - p_at                                       # focal modulating factor
    if ragged:
        mod = rf * mod                                     # exclude padding pixels only

    pv = vf * p                                            # (C, TP)
    vsig = vf * sig                                        # (1, TP)

    # per-step lane reductions (cheap XLU tails; no wide accumulator RMW traffic)
    red_inter = jnp.sum(pv * onehot, axis=1, keepdims=True)   # (C, 1) dice intersection
    red_psum = jnp.sum(pv, axis=1, keepdims=True)             # (C, 1) softmax sums
    red_tsum = jnp.sum(vf * onehot, axis=1, keepdims=True)    # (C, 1) one-hot counts
    red_ce = jnp.sum(vf * ce, axis=1, keepdims=True)          # (1, 1) CE sum
    red_mod = jnp.sum(mod, axis=1, keepdims=True)             # (1, 1) focal factor sum
    red_bce = jnp.sum(vf * bce, axis=1, keepdims=True)        # (1, 1) BCE sum
    red_sp = jnp.sum(vsig, axis=1, keepdims=True)             # (1, 1) sum sigmoid(logit0)
    red_spt = jnp.sum(vsig * t_bg, axis=1, keepdims=True)     # (1, 1) sum sigmoid * target

    @pl.when(t == 0)
    def _():
        out_ref[...] = jnp.zeros_like(out_ref)

    # tiny (3C+5, 1) per-image accumulator living directly in the output block
    out_ref[0:c, :] += red_inter
    out_ref[c:2 * c, :] += red_psum
    out_ref[2 * c:3 * c, :] += red_tsum
    base = 3 * c
    out_ref[base + 0:base + 1, :] += red_ce
    out_ref[base + 1:base + 2, :] += red_mod
    out_ref[base + 2:base + 3, :] += red_bce
    out_ref[base + 3:base + 4, :] += red_sp
    out_ref[base + 4:base + 5, :] += red_spt


def _vmem_capacity_bytes():
    try:
        return int(pltpu.get_tpu_info().vmem_capacity_bytes)
    except Exception:
        return 64 * 1024 * 1024        # conservative (v7x per-TC) fallback


def _pick_pixel_tile(hw, c, x_itemsize, lbl_itemsize):
    """Pixels per block: multiple of 128, as large as the VMEM budget allows
    (amortizes the ~0.35 us per-grid-step overhead), bounded so that the
    double-buffered input blocks plus the live f32 body temporaries fit."""
    if hw <= 128:
        return hw
    budget = int(_vmem_capacity_bytes() * 0.55)
    # per-pixel bytes: double-buffered inputs + ~7 live (C,TP) f32 temporaries
    # (x, z, ez, p, onehot, products) + ~12 (1,TP)-sized rows.
    per_pix = 2 * c * x_itemsize + 2 * lbl_itemsize + 4 * (7 * c + 12)
    tile = (budget // per_pix) // 128 * 128
    tile = min(tile, 64 * 1024, (hw // 128) * 128)
    return max(128, tile)


def segmentation_loss_auxy(y_pred, y_true, y_pred2=None, *,
                           gamma=2.0, bce_scaler=1.0,
                           tver_alpha=0.7, tver_beta=0.3, tver_scaler=1.0,
                           dice_scaler=1.0, smooth=1.0):
    # TODO(synk): 'ce' branch (MCTransAuxLoss / DiscriminativeLoss) is undefined
    #             in the source module, so it (and y_pred2) is not reproduced.
    # TODO(synk): dice C==1 sigmoid branch not implemented (multi-class softmax only).
    # TODO(synk): sublane-packing for C<8 (filling dead sublanes with extra pixel
    #             groups) and folding several small images per grid step omitted.
    n, c, h, w = y_pred.shape
    hw = h * w
    logits = y_pred.reshape(n, c, hw)            # NCHW consumed directly
    labels = y_true.reshape(n, 1, hw)            # native dtype; cast in-kernel

    tp = _pick_pixel_tile(hw, c,
                          jnp.dtype(y_pred.dtype).itemsize,
                          jnp.dtype(y_true.dtype).itemsize)
    nt = pl.cdiv(hw, tp)
    r = 3 * c + 5                                # rows of the per-image partials

    vmem_cap = _vmem_capacity_bytes()
    kernel = functools.partial(_loss_reduce_kernel, hw=hw, tp=tp)
    partials = pl.pallas_call(
        kernel,
        out_shape=jax.ShapeDtypeStruct((n, r, 1), jnp.float32),
        grid_spec=pltpu.PrefetchScalarGridSpec(
            num_scalar_prefetch=0,
            grid=(n, nt),
            in_specs=[pl.BlockSpec((None, c, tp), lambda b, t: (b, 0, t)),
                      pl.BlockSpec((None, 1, tp), lambda b, t: (b, 0, t))],
            out_specs=pl.BlockSpec((None, r, 1), lambda b, t: (b, 0, 0))),
        compiler_params=pltpu.CompilerParams(
            dimension_semantics=("parallel", "arbitrary"),
            vmem_limit_bytes=min(int(0.9 * vmem_cap), 112 * 1024 * 1024)),
    )(logits, labels)

    tot = jnp.sum(partials[:, :, 0], axis=0)     # sum per-image partials -> (3C+5,)
    inter = tot[0:c]                             # dice intersection per class
    psum = tot[c:2 * c]                          # softmax sums per class
    tsum = tot[2 * c:3 * c]                      # one-hot counts per class
    ce_sum = tot[3 * c + 0]
    mod_sum = tot[3 * c + 1]
    bce_sum = tot[3 * c + 2]
    sp = tot[3 * c + 3]                          # sum sigmoid(logit0) over valid
    spt = tot[3 * c + 4]                         # sum sigmoid * bg-target over valid
    valid_cnt = jnp.sum(tsum)                    # labelled (non-ignored) pixels
    st = valid_cnt - tsum[0]                     # valid pixels with label > 0

    # softmax focal loss (softmax_focalloss with scalar gamma)
    ce_mean = ce_sum / valid_cnt
    fc_loss = ce_mean * ((1.0 - gamma / 7.0) * mod_sum) / (valid_cnt + n)

    # binary_cross_entropy_with_logits(y_pred[:,0], bg_y_true, ignore_index=-1)
    bce_loss = (bce_sum / valid_cnt) * bce_scaler

    # tversky_loss_with_logits(y_pred[:,0], bg_y_true)
    tp_ = spt
    fp = sp - spt
    fn = st - spt
    tversky = (tp_ + smooth) / (tp_ + tver_alpha * fn + tver_beta * fp + smooth)
    tver_loss = (1.0 - tversky) * tver_scaler

    # dice_loss_with_logits(y_pred, y_true) (multi-class softmax path, all channels)
    dice_coeff = jnp.mean((2.0 * inter + smooth) / (psum + tsum + smooth))
    dice_loss = (1.0 - dice_coeff) * dice_scaler

    return {"fc_loss": fc_loss, "bceloss": bce_loss,
            "tverloss": tver_loss, "dice_loss": dice_loss}


def _reference(y_pred, y_true, gamma, bce_scaler, tver_alpha, tver_beta,
               tver_scaler, dice_scaler, smooth=1.0):
    """Pure-JAX reference mirroring the PyTorch math (mask-sum form)."""
    n, c, h, w = y_pred.shape
    logits = jnp.transpose(y_pred, (0, 2, 3, 1)).reshape(-1, c).astype(jnp.float32)
    labels = y_true.reshape(-1).astype(jnp.int32)
    valid = labels >= 0
    vf = valid.astype(jnp.float32)
    clamped = jnp.where(valid, labels, 0)
    logp = jax.nn.log_softmax(logits, axis=1)
    p = jnp.exp(logp)
    onehot = jax.nn.one_hot(clamped, c, dtype=jnp.float32)

    ce = -jnp.sum(onehot * logp, axis=1)
    ce_mean = jnp.sum(vf * ce) / jnp.sum(vf)
    p_at = jnp.sum(onehot * p, axis=1)
    mod = (1.0 - p_at) * (1.0 - gamma / 7.0)
    fc = ce_mean * jnp.sum(mod) / (jnp.sum(vf) + n)

    logit0 = logits[:, 0]
    t = (labels > 0).astype(jnp.float32)
    bce = jnp.maximum(logit0, 0.0) - logit0 * t + jnp.log1p(jnp.exp(-jnp.abs(logit0)))
    bce_l = (jnp.sum(vf * bce) / jnp.sum(vf)) * bce_scaler

    sig = jax.nn.sigmoid(logit0)
    tp = jnp.sum(vf * sig * t)
    fp = jnp.sum(vf * sig) - tp
    fn = jnp.sum(vf * t) - tp
    tver = (1.0 - (tp + smooth) / (tp + tver_alpha * fn + tver_beta * fp + smooth)) * tver_scaler

    inter = jnp.sum(vf[:, None] * p * onehot, axis=0)
    ps = jnp.sum(vf[:, None] * p, axis=0)
    ts = jnp.sum(vf[:, None] * onehot, axis=0)
    dice = (1.0 - jnp.mean((2.0 * inter + smooth) / (ps + ts + smooth))) * dice_scaler
    return {"fc_loss": fc, "bceloss": bce_l, "tverloss": tver, "dice_loss": dice}


if __name__ == "__main__":
    key = jax.random.PRNGKey(0)
    k1, k2, k3 = jax.random.split(key, 3)
    N, C, H, W = 2, 4, 16, 16
    y_pred = jax.random.normal(k1, (N, C, H, W), dtype=jnp.float32)
    # labels in {-1, 0, ..., C-1}; -1 is the ignore index
    y_true = jax.random.randint(k2, (N, H, W), -1, C).astype(jnp.int32)
    y_pred2 = jax.random.normal(k3, (N, 1, H, W), dtype=jnp.float32)  # unused ('ce' branch)

    losses = segmentation_loss_auxy(y_pred, y_true, y_pred2)
    losses = {k: jax.block_until_ready(v) for k, v in losses.items()}

    ref = _reference(y_pred, y_true, 2.0, 1.0, 0.7, 0.3, 1.0, 1.0)
    for k in losses:
        got, exp = float(losses[k]), float(ref[k])
        assert abs(got - exp) < 1e-3, (k, got, exp)

    print("KERNEL_OK")
</pallas_src>

<mosaic_0001>
module attributes {stable_mosaic.version = 11 : i64} {
  func.func @_loss_reduce_kernel(%arg0: i32, %arg1: i32, %arg2: memref<1x4x256xf32, #tpu.memory_space<vmem>>, %arg3: memref<1x1x256xi32, #tpu.memory_space<vmem>>, %arg4: memref<1x17x1xf32, #tpu.memory_space<vmem>>) attributes {dimension_semantics = [#tpu.dimension_semantics<parallel>, #tpu.dimension_semantics<arbitrary>], iteration_bounds = array<i64: 2, 1>, scalar_prefetch = 0 : i64, scratch_operands = 0 : i64, tpu.core_type = #tpu.core_type<tc>, window_params = [{transform_indices = @transform_0, window_bounds = array<i64: 1, 4, 256>}, {transform_indices = @transform_1, window_bounds = array<i64: 1, 1, 256>}, {transform_indices = @transform_2, window_bounds = array<i64: 1, 17, 1>}]} {
    %c0 = arith.constant 0 : index
    %c0_0 = arith.constant 0 : index
    %c0_1 = arith.constant 0 : index
    %0 = vector.load %arg2[%c0, %c0_0, %c0_1] : memref<1x4x256xf32, #tpu.memory_space<vmem>>, vector<1x4x256xf32>
    %1 = vector.shape_cast %0 : vector<1x4x256xf32> to vector<4x256xf32>
    %c0_2 = arith.constant 0 : index
    %c0_3 = arith.constant 0 : index
    %c0_4 = arith.constant 0 : index
    %2 = vector.load %arg3[%c0_2, %c0_3, %c0_4] : memref<1x1x256xi32, #tpu.memory_space<vmem>>, vector<1x1x256xi32>
    %3 = vector.shape_cast %2 : vector<1x1x256xi32> to vector<1x256xi32>
    %c0_i32 = arith.constant 0 : i32
    %4 = vector.broadcast %c0_i32 : i32 to vector<1x256xi32>
    %5 = arith.cmpi sge, %3, %4 : vector<1x256xi32>
    %6 = arith.extui %5 : vector<1x256xi1> to vector<1x256xi32>
    %7 = arith.sitofp %6 : vector<1x256xi32> to vector<1x256xf32>
    %c0_i32_5 = arith.constant 0 : i32
    %8 = vector.broadcast %c0_i32_5 : i32 to vector<1x256xi32>
    %9 = arith.select %5, %3, %8 : vector<1x256xi1>, vector<1x256xi32>
    %cst = arith.constant dense<0xFF800000> : vector<256xf32>
    %10 = vector.multi_reduction <maximumf>, %1, %cst [0] : vector<4x256xf32> to vector<256xf32>
    %11 = vector.shape_cast %10 : vector<256xf32> to vector<1x256xf32>
    %12 = vector.broadcast %11 : vector<1x256xf32> to vector<4x256xf32>
    %13 = arith.subf %1, %12 : vector<4x256xf32>
    %14 = math.exp %13 : vector<4x256xf32>
    %cst_6 = arith.constant dense<0.000000e+00> : vector<256xf32>
    %15 = vector.multi_reduction <add>, %14, %cst_6 [0] : vector<4x256xf32> to vector<256xf32>
    %16 = vector.shape_cast %15 : vector<256xf32> to vector<1x256xf32>
    %17 = tpu.reciprocal %16 : vector<1x256xf32> -> vector<1x256xf32>
    %18 = vector.broadcast %17 : vector<1x256xf32> to vector<4x256xf32>
    %19 = arith.mulf %14, %18 : vector<4x256xf32>
    %20 = math.log %16 : vector<1x256xf32>
    %21 = tpu.iota {dimensions = array<i32: 0>} : vector<4x256xi32>
    %22 = vector.broadcast %9 : vector<1x256xi32> to vector<4x256xi32>
    %23 = arith.cmpi eq, %21, %22 : vector<4x256xi32>
    %24 = arith.extui %23 : vector<4x256xi1> to vector<4x256xi32>
    %25 = arith.sitofp %24 : vector<4x256xi32> to vector<4x256xf32>
    %26 = arith.mulf %25, %13 : vector<4x256xf32>
    %cst_7 = arith.constant dense<0.000000e+00> : vector<256xf32>
    %27 = vector.multi_reduction <add>, %26, %cst_7 [0] : vector<4x256xf32> to vector<256xf32>
    %28 = vector.shape_cast %27 : vector<256xf32> to vector<1x256xf32>
    %29 = arith.subf %20, %28 : vector<1x256xf32>
    %30 = arith.subf %28, %20 : vector<1x256xf32>
    %31 = math.exp %30 : vector<1x256xf32>
    %32 = vector.extract_strided_slice %1 {offsets = [0, 0], sizes = [1, 256], strides = [1, 1]} : vector<4x256xf32> to vector<1x256xf32>
    %c0_i32_8 = arith.constant 0 : i32
    %33 = vector.broadcast %c0_i32_8 : i32 to vector<1x256xi32>
    %34 = arith.cmpi sgt, %3, %33 : vector<1x256xi32>
    %35 = arith.extui %34 : vector<1x256xi1> to vector<1x256xi32>
    %36 = arith.sitofp %35 : vector<1x256xi32> to vector<1x256xf32>
    %37 = math.absf %32 : vector<1x256xf32>
    %cst_9 = arith.constant 0.000000e+00 : f32
    %38 = vector.broadcast %cst_9 : f32 to vector<1x256xf32>
    %39 = arith.subf %38, %37 : vector<1x256xf32>
    %40 = math.exp %39 : vector<1x256xf32>
    %cst_10 = arith.constant 0.000000e+00 : f32
    %41 = vector.broadcast %cst_10 : f32 to vector<1x256xf32>
    %42 = arith.cmpf oge, %32, %41 : vector<1x256xf32>
    %cst_11 = arith.constant 1.000000e+00 : f32
    %43 = vector.broadcast %cst_11 : f32 to vector<1x256xf32>
    %44 = arith.select %42, %43, %40 : vector<1x256xi1>, vector<1x256xf32>
    %cst_12 = arith.constant 1.000000e+00 : f32
    %45 = vector.broadcast %cst_12 : f32 to vector<1x256xf32>
    %46 = arith.addf %45, %40 : vector<1x256xf32>
    %47 = tpu.reciprocal %46 : vector<1x256xf32> -> vector<1x256xf32>
    %48 = arith.mulf %44, %47 : vector<1x256xf32>
    %cst_13 = arith.constant 0.000000e+00 : f32
    %49 = vector.broadcast %cst_13 : f32 to vector<1x256xf32>
    %50 = arith.maximumf %32, %49 : vector<1x256xf32>
    %51 = arith.mulf %32, %36 : vector<1x256xf32>
    %52 = arith.subf %50, %51 : vector<1x256xf32>
    %53 = math.log1p %40 : vector<1x256xf32>
    %54 = arith.addf %52, %53 : vector<1x256xf32>
    %cst_14 = arith.constant 1.000000e+00 : f32
    %55 = vector.broadcast %cst_14 : f32 to vector<1x256xf32>
    %56 = arith.subf %55, %31 : vector<1x256xf32>
    %57 = vector.broadcast %7 : vector<1x256xf32> to vector<4x256xf32>
    %58 = arith.mulf %57, %19 : vector<4x256xf32>
    %59 = arith.mulf %7, %48 : vector<1x256xf32>
    %60 = arith.mulf %58, %25 : vector<4x256xf32>
    %cst_15 = arith.constant dense<0.000000e+00> : vector<4xf32>
    %61 = vector.multi_reduction <add>, %60, %cst_15 [1] : vector<4x256xf32> to vector<4xf32>
    %62 = vector.shape_cast %61 : vector<4xf32> to vector<4x1xf32>
    %cst_16 = arith.constant dense<0.000000e+00> : vector<4xf32>
    %63 = vector.multi_reduction <add>, %58, %cst_16 [1] : vector<4x256xf32> to vector<4xf32>
    %64 = vector.shape_cast %63 : vector<4xf32> to vector<4x1xf32>
    %65 = vector.broadcast %7 : vector<1x256xf32> to vector<4x256xf32>
    %66 = arith.mulf %65, %25 : vector<4x256xf32>
    %cst_17 = arith.constant dense<0.000000e+00> : vector<4xf32>
    %67 = vector.multi_reduction <add>, %66, %cst_17 [1] : vector<4x256xf32> to vector<4xf32>
    %68 = vector.shape_cast %67 : vector<4xf32> to vector<4x1xf32>
    %69 = arith.mulf %7, %29 : vector<1x256xf32>
    %cst_18 = arith.constant dense<0.000000e+00> : vector<1xf32>
    %70 = vector.multi_reduction <add>, %69, %cst_18 [1] : vector<1x256xf32> to vector<1xf32>
    %71 = vector.shape_cast %70 : vector<1xf32> to vector<1x1xf32>
    %cst_19 = arith.constant dense<0.000000e+00> : vector<1xf32>
    %72 = vector.multi_reduction <add>, %56, %cst_19 [1] : vector<1x256xf32> to vector<1xf32>
    %73 = vector.shape_cast %72 : vector<1xf32> to vector<1x1xf32>
    %74 = arith.mulf %7, %54 : vector<1x256xf32>
    %cst_20 = arith.constant dense<0.000000e+00> : vector<1xf32>
    %75 = vector.multi_reduction <add>, %74, %cst_20 [1] : vector<1x256xf32> to vector<1xf32>
    %76 = vector.shape_cast %75 : vector<1xf32> to vector<1x1xf32>
    %cst_21 = arith.constant dense<0.000000e+00> : vector<1xf32>
    %77 = vector.multi_reduction <add>, %59, %cst_21 [1] : vector<1x256xf32> to vector<1xf32>
    %78 = vector.shape_cast %77 : vector<1xf32> to vector<1x1xf32>
    %79 = arith.mulf %59, %36 : vector<1x256xf32>
    %cst_22 = arith.constant dense<0.000000e+00> : vector<1xf32>
    %80 = vector.multi_reduction <add>, %79, %cst_22 [1] : vector<1x256xf32> to vector<1xf32>
    %81 = vector.shape_cast %80 : vector<1xf32> to vector<1x1xf32>
    %c0_i32_23 = arith.constant 0 : i32
    %82 = arith.cmpi eq, %arg1, %c0_i32_23 : i32
    %83 = arith.extui %82 : i1 to i32
    %c0_i32_24 = arith.constant 0 : i32
    %84 = arith.cmpi ne, %83, %c0_i32_24 : i32
    scf.if %84 {
      %cst_66 = arith.constant 0.000000e+00 : f32
      %133 = vector.broadcast %cst_66 : f32 to vector<17x1xf32>
      %c0_67 = arith.constant 0 : index
      %c0_68 = arith.constant 0 : index
      %c0_69 = arith.constant 0 : index
      %134 = vector.load %arg4[%c0_67, %c0_68, %c0_69] : memref<1x17x1xf32, #tpu.memory_space<vmem>>, vector<1x17x1xf32>
      %135 = vector.shape_cast %134 : vector<1x17x1xf32> to vector<17x1xf32>
      %136 = vector.shape_cast %133 : vector<17x1xf32> to vector<1x17x1xf32>
      tpu.vector_store %arg4[%c0_67, %c0_68, %c0_69], %136 {strides = array<i32>} : memref<1x17x1xf32, #tpu.memory_space<vmem>>, vector<1x17x1xf32>,
    } else {
    }
    %c0_25 = arith.constant 0 : index
    %c0_26 = arith.constant 0 : index
    %c0_27 = arith.constant 0 : index
    %85 = vector.load %arg4[%c0_25, %c0_26, %c0_27] : memref<1x17x1xf32, #tpu.memory_space<vmem>>, vector<1x4x1xf32>
    %86 = vector.shape_cast %85 : vector<1x4x1xf32> to vector<4x1xf32>
    %87 = arith.addf %86, %62 : vector<4x1xf32>
    %c0_28 = arith.constant 0 : index
    %c0_29 = arith.constant 0 : index
    %c0_30 = arith.constant 0 : index
    %88 = vector.load %arg4[%c0_28, %c0_29, %c0_30] : memref<1x17x1xf32, #tpu.memory_space<vmem>>, vector<1x4x1xf32>
    %89 = vector.shape_cast %88 : vector<1x4x1xf32> to vector<4x1xf32>
    %90 = vector.shape_cast %87 : vector<4x1xf32> to vector<1x4x1xf32>
    tpu.vector_store %arg4[%c0_28, %c0_29, %c0_30], %90 {strides = array<i32>} : memref<1x17x1xf32, #tpu.memory_space<vmem>>, vector<1x4x1xf32>,
    %c0_31 = arith.constant 0 : index
    %c4 = arith.constant 4 : index
    %c0_32 = arith.constant 0 : index
    %91 = vector.load %arg4[%c0_31, %c4, %c0_32] : memref<1x17x1xf32, #tpu.memory_space<vmem>>, vector<1x4x1xf32>
    %92 = vector.shape_cast %91 : vector<1x4x1xf32> to vector<4x1xf32>
    %93 = arith.addf %92, %64 : vector<4x1xf32>
    %c0_33 = arith.constant 0 : index
    %c4_34 = arith.constant 4 : index
    %c0_35 = arith.constant 0 : index
    %94 = vector.load %arg4[%c0_33, %c4_34, %c0_35] : memref<1x17x1xf32, #tpu.memory_space<vmem>>, vector<1x4x1xf32>
    %95 = vector.shape_cast %94 : vector<1x4x1xf32> to vector<4x1xf32>
    %96 = vector.shape_cast %93 : vector<4x1xf32> to vector<1x4x1xf32>
    tpu.vector_store %arg4[%c0_33, %c4_34, %c0_35], %96 {strides = array<i32>} : memref<1x17x1xf32, #tpu.memory_space<vmem>>, vector<1x4x1xf32>,
    %c0_36 = arith.constant 0 : index
    %c8 = arith.constant 8 : index
    %c0_37 = arith.constant 0 : index
    %97 = vector.load %arg4[%c0_36, %c8, %c0_37] : memref<1x17x1xf32, #tpu.memory_space<vmem>>, vector<1x4x1xf32>
    %98 = vector.shape_cast %97 : vector<1x4x1xf32> to vector<4x1xf32>
    %99 = arith.addf %98, %68 : vector<4x1xf32>
    %c0_38 = arith.constant 0 : index
    %c8_39 = arith.constant 8 : index
    %c0_40 = arith.constant 0 : index
    %100 = vector.load %arg4[%c0_38, %c8_39, %c0_40] : memref<1x17x1xf32, #tpu.memory_space<vmem>>, vector<1x4x1xf32>
    %101 = vector.shape_cast %100 : vector<1x4x1xf32> to vector<4x1xf32>
    %102 = vector.shape_cast %99 : vector<4x1xf32> to vector<1x4x1xf32>
    tpu.vector_store %arg4[%c0_38, %c8_39, %c0_40], %102 {strides = array<i32>} : memref<1x17x1xf32, #tpu.memory_space<vmem>>, vector<1x4x1xf32>,
    %c0_41 = arith.constant 0 : index
    %c12 = arith.constant 12 : index
    %c0_42 = arith.constant 0 : index
    %103 = vector.load %arg4[%c0_41, %c12, %c0_42] : memref<1x17x1xf32, #tpu.memory_space<vmem>>, vector<1x1x1xf32>
    %104 = vector.shape_cast %103 : vector<1x1x1xf32> to vector<1x1xf32>
    %105 = arith.addf %104, %71 : vector<1x1xf32>
    %c0_43 = arith.constant 0 : index
    %c12_44 = arith.constant 12 : index
    %c0_45 = arith.constant 0 : index
    %106 = vector.load %arg4[%c0_43, %c12_44, %c0_45] : memref<1x17x1xf32, #tpu.memory_space<vmem>>, vector<1x1x1xf32>
    %107 = vector.shape_cast %106 : vector<1x1x1xf32> to vector<1x1xf32>
    %108 = vector.shape_cast %105 : vector<1x1xf32> to vector<1x1x1xf32>
    tpu.vector_store %arg4[%c0_43, %c12_44, %c0_45], %108 {strides = array<i32>} : memref<1x17x1xf32, #tpu.memory_space<vmem>>, vector<1x1x1xf32>,
    %c0_46 = arith.constant 0 : index
    %c13 = arith.constant 13 : index
    %c0_47 = arith.constant 0 : index
    %109 = vector.load %arg4[%c0_46, %c13, %c0_47] : memref<1x17x1xf32, #tpu.memory_space<vmem>>, vector<1x1x1xf32>
    %110 = vector.shape_cast %109 : vector<1x1x1xf32> to vector<1x1xf32>
    %111 = arith.addf %110, %73 : vector<1x1xf32>
    %c0_48 = arith.constant 0 : index
    %c13_49 = arith.constant 13 : index
    %c0_50 = arith.constant 0 : index
    %112 = vector.load %arg4[%c0_48, %c13_49, %c0_50] : memref<1x17x1xf32, #tpu.memory_space<vmem>>, vector<1x1x1xf32>
    %113 = vector.shape_cast %112 : vector<1x1x1xf32> to vector<1x1xf32>
    %114 = vector.shape_cast %111 : vector<1x1xf32> to vector<1x1x1xf32>
    tpu.vector_store %arg4[%c0_48, %c13_49, %c0_50], %114 {strides = array<i32>} : memref<1x17x1xf32, #tpu.memory_space<vmem>>, vector<1x1x1xf32>,
    %c0_51 = arith.constant 0 : index
    %c14 = arith.constant 14 : index
    %c0_52 = arith.constant 0 : index
    %115 = vector.load %arg4[%c0_51, %c14, %c0_52] : memref<1x17x1xf32, #tpu.memory_space<vmem>>, vector<1x1x1xf32>
    %116 = vector.shape_cast %115 : vector<1x1x1xf32> to vector<1x1xf32>
    %117 = arith.addf %116, %76 : vector<1x1xf32>
    %c0_53 = arith.constant 0 : index
    %c14_54 = arith.constant 14 : index
    %c0_55 = arith.constant 0 : index
    %118 = vector.load %arg4[%c0_53, %c14_54, %c0_55] : memref<1x17x1xf32, #tpu.memory_space<vmem>>, vector<1x1x1xf32>
    %119 = vector.shape_cast %118 : vector<1x1x1xf32> to vector<1x1xf32>
    %120 = vector.shape_cast %117 : vector<1x1xf32> to vector<1x1x1xf32>
    tpu.vector_store %arg4[%c0_53, %c14_54, %c0_55], %120 {strides = array<i32>} : memref<1x17x1xf32, #tpu.memory_space<vmem>>, vector<1x1x1xf32>,
    %c0_56 = arith.constant 0 : index
    %c15 = arith.constant 15 : index
    %c0_57 = arith.constant 0 : index
    %121 = vector.load %arg4[%c0_56, %c15, %c0_57] : memref<1x17x1xf32, #tpu.memory_space<vmem>>, vector<1x1x1xf32>
    %122 = vector.shape_cast %121 : vector<1x1x1xf32> to vector<1x1xf32>
    %123 = arith.addf %122, %78 : vector<1x1xf32>
    %c0_58 = arith.constant 0 : index
    %c15_59 = arith.constant 15 : index
    %c0_60 = arith.constant 0 : index
    %124 = vector.load %arg4[%c0_58, %c15_59, %c0_60] : memref<1x17x1xf32, #tpu.memory_space<vmem>>, vector<1x1x1xf32>
    %125 = vector.shape_cast %124 : vector<1x1x1xf32> to vector<1x1xf32>
    %126 = vector.shape_cast %123 : vector<1x1xf32> to vector<1x1x1xf32>
    tpu.vector_store %arg4[%c0_58, %c15_59, %c0_60], %126 {strides = array<i32>} : memref<1x17x1xf32, #tpu.memory_space<vmem>>, vector<1x1x1xf32>,
    %c0_61 = arith.constant 0 : index
    %c16 = arith.constant 16 : index
    %c0_62 = arith.constant 0 : index
    %127 = vector.load %arg4[%c0_61, %c16, %c0_62] : memref<1x17x1xf32, #tpu.memory_space<vmem>>, vector<1x1x1xf32>
    %128 = vector.shape_cast %127 : vector<1x1x1xf32> to vector<1x1xf32>
    %129 = arith.addf %128, %81 : vector<1x1xf32>
    %c0_63 = arith.constant 0 : index
    %c16_64 = arith.constant 16 : index
    %c0_65 = arith.constant 0 : index
    %130 = vector.load %arg4[%c0_63, %c16_64, %c0_65] : memref<1x17x1xf32, #tpu.memory_space<vmem>>, vector<1x1x1xf32>
    %131 = vector.shape_cast %130 : vector<1x1x1xf32> to vector<1x1xf32>
    %132 = vector.shape_cast %129 : vector<1x1xf32> to vector<1x1x1xf32>
    tpu.vector_store %arg4[%c0_63, %c16_64, %c0_65], %132 {strides = array<i32>} : memref<1x17x1xf32, #tpu.memory_space<vmem>>, vector<1x1x1xf32>,
    return
  }
  func.func @transform_0(%arg0: i32, %arg1: i32) -> (i32, i32, i32) {
    %c0_i32 = arith.constant 0 : i32
    %c0_i32_0 = arith.constant 0 : i32
    return %arg0, %c0_i32, %arg1 : i32, i32, i32
  }
  func.func @transform_1(%arg0: i32, %arg1: i32) -> (i32, i32, i32) {
    %c0_i32 = arith.constant 0 : i32
    %c0_i32_0 = arith.constant 0 : i32
    return %arg0, %c0_i32, %arg1 : i32, i32, i32
  }
  func.func @transform_2(%arg0: i32, %arg1: i32) -> (i32, i32, i32) {
    %c0_i32 = arith.constant 0 : i32
    %c0_i32_0 = arith.constant 0 : i32
    %c0_i32_1 = arith.constant 0 : i32
    return %arg0, %c0_i32, %c0_i32_0 : i32, i32, i32
  }
}

</mosaic_0001>

<llo_original>
// kernel: tpu_custom_call.1
$region0: #{tpu_custom_call.1}
  #allocation0 [shape = 'u32[]', space=smem, size = 0x4, offset = 0x4, fixed_abs, tag = 'smem constant byte address 0x4 - core index']
  #allocation1 [shape = 'u32[144,128]{1,0:T(1,128)}', space=vmem, size = 0x12000, scoped, tag = 'internal scratch']
  %s0 = inlined_call_operand.hbm [shape: f32[2,4,256], index: 0, kind: input, shape index: {}]
  %s1 = inlined_call_operand.hbm [shape: s32[2,1,256], index: 1, kind: input, shape index: {}]
  %s2 = inlined_call_operand.vmem [shape: f32[2,17,1], index: 2, kind: output, shape index: {}]
  %s3 = sld [smem:[#allocation0]]
  $region53: #{tpu_custom_call.1} parent=0
    _
  %s5 = ssub.s32 1, %s3
  %s6 = scalar_select 0, %s5, %s3
  $region1: #{tpu_custom_call.1} parent=0
    #allocation2 [shape = 'u8[8192]{0}', space=vmem, size = 0x2000, scoped, tag = 'input window, operand 0']
    #allocation3 [shape = 's32[2]{0}', space=sflag, size = 0x8, scoped, tag = 'scoped memory for tpu_custom_call.1']
    #allocation4 [shape = 'u8[2048]{0}', space=vmem, size = 0x800, scoped, tag = 'input window, operand 1']
    #allocation5 [shape = 's32[2]{0}', space=sflag, size = 0x8, scoped, tag = 'scoped memory for tpu_custom_call.1']
    %7 = vsyncpa [#allocation3], 0
    %s8 = scalar_lea.sflag [#allocation3], 1
    %9 = vsyncpa %s8, 0
    %10 = vsyncpa [#allocation5], 0
    %s11 = scalar_lea.sflag [#allocation5], 1
    %12 = vsyncpa %s11, 0
    loop: start=0, step=1, limit=4
    $region2: #{tpu_custom_call.1} parent=1 // loop_pre_header
      _
    $region3: #{tpu_custom_call.1} parent=1 // loop_header
      %s14 = sphi 0, %s18
      %p15 = scmp.ge.s32.totalorder %s14, 4
      %s21 = sphi 0, %s33
      %s22 = sphi 0, %s29
      %s23 = sphi 0, %s21
      %s24 = sphi 0, %s22
      %s25 = sphi 0, %s23
      %s26 = sphi 0, %s24
      %s38 = sphi 0, %s40
      %s41 = sphi 0, %s38
      %s42 = sphi 0, %s41
      %s58 = sphi 0, %s42
      %s66 = sphi 0, %s68
      %s69 = sphi 0, %s66
      %s70 = sphi 0, %s69
      %s86 = sphi 0, %s70
      %s92 = sphi 0, %s94
      %s95 = sphi 0, %s92
      %s96 = sphi 0, %s95
      %s112 = sphi 0, %s96
    $region4: #{tpu_custom_call.1} parent=1 // loop_header_branch
      %17 = sbr.rel (%p15) target = $region8
    $region5: #{tpu_custom_call.1} parent=1 // loop_body
      %s19 = ssub.s32 %s14, 1
      %s20 = ssub.s32 %s14, 2
      %s27 = sadd.s32 1, %s22
      %p28 = scmp.ge.s32.totalorder %s27, 1
      %s29 = scalar_select %p28, 0, %s27
      %s30 = sadd.s32 1, %s21
      %s31 = scalar_select %p28, %s30, %s21
      %p32 = scmp.ge.s32.totalorder %s31, 2
      %s33 = scalar_select %p32, 0, %s31
      %s34 = ssub.s32 %s21, %s33
      %s35 = ssub.s32 %s22, %s29
      %s36 = sor.u32 %s34, %s35
      %p37 = scmp.eq.s32.totalorder %s36, 0
      %s39 = sadd.s32 %s38, 1
      %s40 = scalar_select %p37, %s38, %s39
      %p43 = pneg %p37
      %p44 = scmp.eq.s32.totalorder %s14, 1
      %p45 = por %p43, %p44
      %p46 = scmp.ne.s32.totalorder %s38, %s41
      %p47 = scmp.eq.s32.totalorder %s14, 0
      %p48 = por %p46, %p47
      %p49 = scmp.ne.s32.totalorder %s38, %s41
      %p50 = scmp.eq.s32.totalorder %s19, 1
      %p51 = por %p49, %p50
      %p52 = scmp.ne.s32.totalorder %s41, %s42
      %p53 = scmp.eq.s32.totalorder %s19, 0
      %p54 = por %p52, %p53
      %p55 = scmp.ne.s32.totalorder %s41, %s42
      %p56 = scmp.eq.s32.totalorder %s20, 1
      %p57 = por %p55, %p56
      %p59 = scmp.ne.s32.totalorder %s42, %s58
      %p60 = scmp.eq.s32.totalorder %s20, 0
      %p61 = por %p59, %p60
      %s62 = ssub.s32 %s21, %s33
      %s63 = ssub.s32 %s22, %s29
      %s64 = sor.u32 %s62, %s63
      %p65 = scmp.eq.s32.totalorder %s64, 0
      %s67 = sadd.s32 %s66, 1
      %s68 = scalar_select %p65, %s66, %s67
      %p71 = pneg %p65
      %p72 = scmp.eq.s32.totalorder %s14, 1
      %p73 = por %p71, %p72
      %p74 = scmp.ne.s32.totalorder %s66, %s69
      %p75 = scmp.eq.s32.totalorder %s14, 0
      %p76 = por %p74, %p75
      %p77 = scmp.ne.s32.totalorder %s66, %s69
      %p78 = scmp.eq.s32.totalorder %s19, 1
      %p79 = por %p77, %p78
      %p80 = scmp.ne.s32.totalorder %s69, %s70
      %p81 = scmp.eq.s32.totalorder %s19, 0
      %p82 = por %p80, %p81
      %p83 = scmp.ne.s32.totalorder %s69, %s70
      %p84 = scmp.eq.s32.totalorder %s20, 1
      %p85 = por %p83, %p84
      %p87 = scmp.ne.s32.totalorder %s70, %s86
      %p88 = scmp.eq.s32.totalorder %s20, 0
      %p89 = por %p87, %p88
      %s90 = ssub.s32 %s21, %s33
      %p91 = scmp.eq.s32.totalorder %s90, 0
      %s93 = sadd.s32 %s92, 1
      %s94 = scalar_select %p91, %s92, %s93
      %p97 = pneg %p91
      %p98 = scmp.eq.s32.totalorder %s14, 1
      %p99 = por %p97, %p98
      %p100 = scmp.ne.s32.totalorder %s92, %s95
      %p101 = scmp.eq.s32.totalorder %s14, 0
      %p102 = por %p100, %p101
      %p103 = scmp.ne.s32.totalorder %s92, %s95
      %p104 = scmp.eq.s32.totalorder %s19, 1
      %p105 = por %p103, %p104
      %p106 = scmp.ne.s32.totalorder %s95, %s96
      %p107 = scmp.eq.s32.totalorder %s19, 0
      %p108 = por %p106, %p107
      %p109 = scmp.ne.s32.totalorder %s95, %s96
      %p110 = scmp.eq.s32.totalorder %s20, 1
      %p111 = por %p109, %p110
      %p113 = scmp.ne.s32.totalorder %s96, %s112
      %p114 = scmp.eq.s32.totalorder %s20, 0
      %p115 = por %p113, %p114
      %p116 = scmp.le.s32.totalorder 1, %s14
      %p117 = scmp.lt.s32.totalorder %s14, 3
      %p118 = pnand %p116, %p117
      %p119 = pneg %p118
      // Predicated region
      $region9: #{tpu_custom_call.1} parent=5 // pred_check
        _
      $region10: #{tpu_custom_call.1} parent=5 // pred_check_branch
        %121 = sbr.rel (%p118) target = $region12
      $region11: #{tpu_custom_call.1} parent=5 // pred_region
        %s122 = ssub.s32 %s14, 1
      $region12: #{tpu_custom_call.1} parent=5 // pred_fallthru
        _
      %p123 = scmp.lt.s32.totalorder %s14, 2
      // Predicated region
      $region13: #{tpu_custom_call.1} parent=5 // pred_check
        %p124 = pneg %p123
      $region14: #{tpu_custom_call.1} parent=5 // pred_check_branch
        %126 = sbr.rel (%p124) target = $region16
      $region15: #{tpu_custom_call.1} parent=5 // pred_region
        // Predicated region
        $region17: #{tpu_custom_call.1} parent=15 // pred_check
          %p127 = pneg %p48
        $region18: #{tpu_custom_call.1} parent=15 // pred_check_branch
          %129 = sbr.rel (%p127) target = $region20
        $region19: #{tpu_custom_call.1} parent=15 // pred_region
          %s130 = sand.u32 %s38, 1
          %s131 = scalar_lea.sflag [#allocation3], %s130
          %s132 = sand.u32 %s38, 1
          %s133 = smul.addr %s132, 8
          %s134 = scalar_lea.vmem [#allocation2], %s133
          %s135 = smul.u32 2, %s22
          %s137 = ssub.s32 128, 128
          %138 = vsyncadd %s131, %s137
          %s139 = smul.addr %s21, 2
          %s140 = sadd.s32 %s135, %s139
          %s141 = smul.addr %s140, 64
          %s142 = scalar_lea.hbm %s0, %s141
          %s144 = sshll.u32 %s134, 4
          %s145 = int_to_ptr.vmem [resolvable:$true] %s144
          %147 = dma.hbm_to_vmem [thread:$0]  %s142, 128, %s145, %s131
        $region20: #{tpu_custom_call.1} parent=15 // pred_fallthru
          _
        // Predicated region
        $region21: #{tpu_custom_call.1} parent=15 // pred_check
          %p148 = pneg %p76
        $region22: #{tpu_custom_call.1} parent=15 // pred_check_branch
          %150 = sbr.rel (%p148) target = $region24
        $region23: #{tpu_custom_call.1} parent=15 // pred_region
          %s151 = sand.u32 %s66, 1
          %s152 = scalar_lea.sflag [#allocation5], %s151
          %s153 = sand.u32 %s66, 1
          %s154 = smul.addr %s153, 2
          %s155 = scalar_lea.vmem [#allocation4], %s154
          %s156 = smul.u32 2, %s22
          %s158 = ssub.s32 32, 32
          %159 = vsyncadd %s152, %s158
          %s160 = smul.addr %s21, 2
          %s161 = sadd.s32 %s156, %s160
          %s162 = smul.addr %s161, 16
          %s163 = scalar_lea.hbm %s1, %s162
          %s165 = sshll.u32 %s155, 4
          %s166 = int_to_ptr.vmem [resolvable:$true] %s165
          %168 = dma.hbm_to_vmem [thread:$0]  %s163, 32, %s166, %s152
        $region24: #{tpu_custom_call.1} parent=15 // pred_fallthru
          _
      $region16: #{tpu_custom_call.1} parent=5 // pred_fallthru
        _
      %p169 = scmp.le.s32.totalorder 1, %s14
      %p170 = scmp.lt.s32.totalorder %s14, 3
      %p171 = pnand %p169, %p170
      %p172 = pneg %p171
      // Predicated region
      $region25: #{tpu_custom_call.1} parent=5 // pred_check
        _
      $region26: #{tpu_custom_call.1} parent=5 // pred_check_branch
        %174 = sbr.rel (%p171) target = $region28
      $region27: #{tpu_custom_call.1} parent=5 // pred_region
        %s175 = ssub.s32 %s14, 1
        %s176 = sand.u32 %s41, 1
        %s177 = scalar_lea.sflag [#allocation3], %s176
        %s178 = sand.u32 %s41, 1
        %s179 = smul.addr %s178, 8
        %s180 = scalar_lea.vmem [#allocation2], %s179
        // Predicated region
        $region29: #{tpu_custom_call.1} parent=27 // pred_check
          %p181 = pneg %p54
        $region30: #{tpu_custom_call.1} parent=27 // pred_check_branch
          %183 = sbr.rel (%p181) target = $region32
        $region31: #{tpu_custom_call.1} parent=27 // pred_region
          %184 = dma.done %s177, 128
        $region32: #{tpu_custom_call.1} parent=27 // pred_fallthru
          _
        %s185 = sand.u32 %s69, 1
        %s186 = scalar_lea.sflag [#allocation5], %s185
        %s187 = sand.u32 %s69, 1
        %s188 = smul.addr %s187, 2
        %s189 = scalar_lea.vmem [#allocation4], %s188
        // Predicated region
        $region33: #{tpu_custom_call.1} parent=27 // pred_check
          %p190 = pneg %p82
        $region34: #{tpu_custom_call.1} parent=27 // pred_check_branch
          %192 = sbr.rel (%p190) target = $region36
        $region35: #{tpu_custom_call.1} parent=27 // pred_region
          %193 = dma.done %s186, 32
        $region36: #{tpu_custom_call.1} parent=27 // pred_fallthru
          _
        %s194 = sand.u32 %s41, 1
        %s195 = scalar_lea.sflag [#allocation3], %s194
        %s196 = sand.u32 %s41, 1
        %s197 = smul.addr %s196, 8
        %s198 = scalar_lea.vmem [#allocation2], %s197
        %p199 = pneg %p54
        %p200 = pneg %p51
        %s201 = sand.u32 %s69, 1
        %s202 = scalar_lea.sflag [#allocation5], %s201
        %s203 = sand.u32 %s69, 1
        %s204 = smul.addr %s203, 2
        %s205 = scalar_lea.vmem [#allocation4], %s204
        %p206 = pneg %p82
        %p207 = pneg %p79
        %p208 = pneg %p108
        %p209 = pneg %p105
        %p210 = scmp.lt.s32.totalorder %s23, 1
        %s211 = scalar_select %p210, %s23, 1
        %s212 = smul.addr %s211, 3
        %s213 = smul.addr %s212, 8
        %s214 = scalar_lea.vmem %s2, %s213
        %s215 = smul.u32 2, %s24
        %s216 = smul.u32 2, %s24
        %p217 = scmp.lt.s32.totalorder %s23, 1
        %s218 = scalar_select %p217, %s23, 1
        %s219 = smul.addr %s218, 3
        %s220 = smul.addr %s219, 8
        %s221 = scalar_lea.vmem %s2, %s220
        %v222 = vld [vmem:[%s180] sm:$0xff]
        %v223 = vld [vmem:[%s189] sm:$0x3]
        %vm224 = vcmp.ge.s32.totalorder %v223, 0
        %v225 = vsel %vm224, 1, 0
        %v226 = vcvt.s32.f32 %v225
        %v227 = vsel %vm224, %v223, 0
        %v229 = vcombine.high %v222, %v222
        %vm231 = vcmask 1043456
        %v232 = vsel %vm231, %v222, -inf
        %v233 = vrot.slane %v232, 4
        %v234 = vmax.f32 %v232, %v233
        %v235 = vrot.slane %v234, 2
        %v236 = vmax.f32 %v234, %v235
        %v237 = vrot.slane %v236, 1
        %v238 = vmax.f32 %v236, %v237
        %v239 = vsel %vm231, %v229, -inf
        %v240 = vrot.slane %v239, 4
        %v241 = vmax.f32 %v239, %v240
        %v242 = vrot.slane %v241, 2
        %v243 = vmax.f32 %v241, %v242
        %v244 = vrot.slane %v243, 1
        %v245 = vmax.f32 %v243, %v244
        %v248 = vcombine.low %v238, %v245
        %v250 = vsub.f32 %v222, %v248
        %v251 = vmul.f32 %v250, 1.442695
        %v252 = vpow.pop %v251
        %v254 = vcombine.high %v252, %v252
        %v256 = vsel %vm231, %v252, 0.0
        %v257 = vrot.slane %v256, 4
        %v258 = vadd.f32 %v256, %v257
        %v259 = vrot.slane %v258, 2
        %v260 = vadd.f32 %v258, %v259
        %v261 = vrot.slane %v260, 1
        %v262 = vadd.f32 %v260, %v261
        %v263 = vsel %vm231, %v254, 0.0
        %v264 = vrot.slane %v263, 4
        %v265 = vadd.f32 %v263, %v264
        %v266 = vrot.slane %v265, 2
        %v267 = vadd.f32 %v265, %v266
        %v268 = vrot.slane %v267, 1
        %v269 = vadd.f32 %v267, %v268
        %v270 = vrcp.pop %v262
        %v271 = vrcp.pop %v269
        %v274 = vcombine.low %v270, %v271
        %v276 = vmul.f32 %v252, %v274
        %v277 = vlog2.pop %v262
        %v278 = vmul.f32 %v277, 0.6931472
        %v279 = vlog2.pop %v269
        %v280 = vmul.f32 %v279, 0.6931472
        %v281 = vlaneseq
        %v282 = vshrl.u32 %v281, 7
        %v283 = vlaneseq
        %v284 = vshrl.u32 %v283, 7
        %v285 = vsub.s32 0, %v284
        %v286 = vrot.slane %v227, %v285
        %v287 = vlaneseq
        %v288 = vshrl.u32 %v287, 7
        %v289 = vsub.s32 1, %v288
        %v290 = vrot.slane %v227, %v289
        %vm291 = vcmp.eq.s32.totalorder %v282, %v286
        %vm292 = vcmp.eq.s32.totalorder %v282, %v290
        %v293 = vsel %vm291, 1, 0
        %v294 = vsel %vm292, 1, 0
        %v295 = vcvt.s32.f32 %v293
        %v296 = vcvt.s32.f32 %v294
        %v298 = vcombine.high %v250, %v250
        %v300 = vmul.f32 %v295, %v250
        %v301 = vmul.f32 %v296, %v298
        %v302 = vsel %vm231, %v300, 0.0
        %v303 = vrot.slane %v302, 4
        %v304 = vadd.f32 %v302, %v303
        %v305 = vrot.slane %v304, 2
        %v306 = vadd.f32 %v304, %v305
        %v307 = vrot.slane %v306, 1
        %v308 = vadd.f32 %v306, %v307
        %v309 = vsel %vm231, %v301, 0.0
        %v310 = vrot.slane %v309, 4
        %v311 = vadd.f32 %v309, %v310
        %v312 = vrot.slane %v311, 2
        %v313 = vadd.f32 %v311, %v312
        %v314 = vrot.slane %v313, 1
        %v315 = vadd.f32 %v313, %v314
        %v316 = vsub.f32 %v278, %v308
        %v317 = vsub.f32 %v280, %v315
        %v318 = vsub.f32 %v308, %v278
        %v319 = vsub.f32 %v315, %v280
        %v320 = vmul.f32 %v318, 1.442695
        %v321 = vpow.pop %v320
        %v322 = vmul.f32 %v319, 1.442695
        %v323 = vpow.pop %v322
        %vm324 = vcmp.gt.s32.totalorder %v223, 0
        %v325 = vsel %vm324, 1, 0
        %v326 = vcvt.s32.f32 %v325
        %v327 = vand.u32 2147483647, %v222
        %v328 = vsub.f32 0.0, %v327
        %v329 = vmul.f32 %v328, 1.442695
        %v330 = vpow.pop %v329
        %vm331 = vcmp.ge.f32.partialorder %v222, 0.0
        %v332 = vsel %vm331, 1.0, %v330
        %v333 = vadd.f32 %v330, 1.0
        %v334 = vrcp.pop %v333
        %v335 = vmul.f32 %v332, %v334
        %v336 = vmax.f32 %v222, 0.0
        %v339 = vunpack.c.l.s4 286326784
        %v340 = vunpack.c.0.s8 %v339
        %v341 = vlaneseq
        %v342 = vshrl.u32 %v341, 7
        %v343 = vsub.s32 %v340, %v342
        %v344 = vrot.slane %v326, %v343
        %v346 = vmul.f32 %v222, %v344
        %v347 = vsub.f32 %v336, %v346
        %v348 = vadd.f32 %v330, 1.0
        %v349 = vlog2.pop %v348
        %v350 = vmul.f32 %v349, 0.6931472
        %v351 = vmul.f32 -0.5, %v330
        %v352 = vadd.f32 %v351, 1.0
        %v353 = vmul.f32 %v352, %v330
        %v354 = vand.u32 2147483647, %v330
        %vm355 = vcmp.lt.f32.partialorder %v354, 0.0004427343
        %v356 = vsel %vm355, %v353, %v350
        %v357 = vadd.f32 %v347, %v356
        %v358 = vsub.f32 1.0, %v321
        %v359 = vsub.f32 1.0, %v323
        %v361 = vlaneseq
        %v362 = vshrl.u32 %v361, 7
        %v363 = vsub.s32 0, %v362
        %v364 = vrot.slane %v226, %v363
        %v365 = vlaneseq
        %v366 = vshrl.u32 %v365, 7
        %v367 = vsub.s32 1, %v366
        %v368 = vrot.slane %v226, %v367
        %v372 = vcombine.high %v276, %v276
        %v374 = vmul.f32 %v364, %v276
        %v375 = vmul.f32 %v368, %v372
        %v378 = vunpack.c.l.s4 1966171168
        %v379 = vunpack.c.0.s8 %v378
        %v380 = vlaneseq
        %v381 = vshrl.u32 %v380, 7
        %v382 = vsub.s32 %v379, %v381
        %v383 = vrot.slane %v335, %v382
        %v385 = vunpack.c.l.s4 1966171168
        %v386 = vunpack.c.0.s8 %v385
        %v387 = vlaneseq
        %v388 = vshrl.u32 %v387, 7
        %v389 = vsub.s32 %v386, %v388
        %v390 = vrot.slane %v383, %v389
        %v392 = vmul.f32 %v226, %v390
        %v393 = vmul.f32 %v374, %v295
        %v394 = vmul.f32 %v375, %v296
        %v395 = vsel %vm231, %v393, 0.0
        %v396 = vsel %vm231, %v394, 0.0
        %v397 = vadd.f32 %v395, %v396
        %398 = vadd.xlane.f32.xlu0 %v397
        %v399 = vpop.xlane.xlu0 %398
        %v400 = vsel %vm231, %v374, 0.0
        %v401 = vsel %vm231, %v375, 0.0
        %v402 = vadd.f32 %v400, %v401
        %403 = vadd.xlane.f32.xlu0 %v402
        %v404 = vpop.xlane.xlu0 %403
        %v405 = vmul.f32 %v364, %v295
        %v406 = vmul.f32 %v368, %v296
        %v407 = vsel %vm231, %v405, 0.0
        %v408 = vsel %vm231, %v406, 0.0
        %v409 = vadd.f32 %v407, %v408
        %410 = vadd.xlane.f32.xlu0 %v409
        %v411 = vpop.xlane.xlu0 %410
        %v414 = vcombine.low %v316, %v317
        %v416 = vunpack.c.l.s4 1966171168
        %v417 = vunpack.c.0.s8 %v416
        %v418 = vlaneseq
        %v419 = vshrl.u32 %v418, 7
        %v420 = vsub.s32 %v417, %v419
        %v421 = vrot.slane %v414, %v420
        %v423 = vunpack.c.l.s4 1966171168
        %v424 = vunpack.c.0.s8 %v423
        %v425 = vlaneseq
        %v426 = vshrl.u32 %v425, 7
        %v427 = vsub.s32 %v424, %v426
        %v428 = vrot.slane %v421, %v427
        %v430 = vmul.f32 %v226, %v428
        %v432 = vlaneseq
        %v433 = vshrl.u32 %v432, 7
        %v434 = vsub.s32 0, %v433
        %v435 = vrot.slane %v430, %v434
        %v436 = vlaneseq
        %v437 = vshrl.u32 %v436, 7
        %v438 = vsub.s32 1, %v437
        %v439 = vrot.slane %v430, %v438
        %vm442 = vcmask 1040384
        %v443 = vsel %vm442, %v435, 0.0
        %v444 = vsel %vm442, %v439, 0.0
        %v445 = vadd.f32 %v443, %v444
        %446 = vadd.xlane.f32.xlu0 %v445
        %v447 = vpop.xlane.xlu0 %446
        %v448 = vadd.f32 %v358, %v359
        %449 = vadd.xlane.f32.xlu0 %v448
        %v450 = vpop.xlane.xlu0 %449
        %v453 = vunpack.c.l.s4 1966171168
        %v454 = vunpack.c.0.s8 %v453
        %v455 = vlaneseq
        %v456 = vshrl.u32 %v455, 7
        %v457 = vsub.s32 %v454, %v456
        %v458 = vrot.slane %v357, %v457
        %v460 = vunpack.c.l.s4 1966171168
        %v461 = vunpack.c.0.s8 %v460
        %v462 = vlaneseq
        %v463 = vshrl.u32 %v462, 7
        %v464 = vsub.s32 %v461, %v463
        %v465 = vrot.slane %v458, %v464
        %v467 = vmul.f32 %v226, %v465
        %v469 = vlaneseq
        %v470 = vshrl.u32 %v469, 7
        %v471 = vsub.s32 0, %v470
        %v472 = vrot.slane %v467, %v471
        %v473 = vlaneseq
        %v474 = vshrl.u32 %v473, 7
        %v475 = vsub.s32 1, %v474
        %v476 = vrot.slane %v467, %v475
        %v479 = vsel %vm442, %v472, 0.0
        %v480 = vsel %vm442, %v476, 0.0
        %v481 = vadd.f32 %v479, %v480
        %482 = vadd.xlane.f32.xlu0 %v481
        %v483 = vpop.xlane.xlu0 %482
        %v485 = vlaneseq
        %v486 = vshrl.u32 %v485, 7
        %v487 = vsub.s32 0, %v486
        %v488 = vrot.slane %v392, %v487
        %v489 = vlaneseq
        %v490 = vshrl.u32 %v489, 7
        %v491 = vsub.s32 1, %v490
        %v492 = vrot.slane %v392, %v491
        %v495 = vsel %vm442, %v488, 0.0
        %v496 = vsel %vm442, %v492, 0.0
        %v497 = vadd.f32 %v495, %v496
        %498 = vadd.xlane.f32.xlu0 %v497
        %v499 = vpop.xlane.xlu0 %498
        %v500 = vmul.f32 %v392, %v326
        %v502 = vlaneseq
        %v503 = vshrl.u32 %v502, 7
        %v504 = vsub.s32 0, %v503
        %v505 = vrot.slane %v500, %v504
        %v506 = vlaneseq
        %v507 = vshrl.u32 %v506, 7
        %v508 = vsub.s32 1, %v507
        %v509 = vrot.slane %v500, %v508
        %v512 = vsel %vm442, %v505, 0.0
        %v513 = vsel %vm442, %v509, 0.0
        %v514 = vadd.f32 %v512, %v513
        %515 = vadd.xlane.f32.xlu0 %v514
        %v516 = vpop.xlane.xlu0 %515
        %p517 = scmp.eq.s32.totalorder %s24, 0
        // Predicated region
        $region37: #{tpu_custom_call.1} parent=27 // pred_check
          %p518 = pneg %p517
        $region38: #{tpu_custom_call.1} parent=27 // pred_check_branch
          %520 = sbr.rel (%p518) target = $region40
        $region39: #{tpu_custom_call.1} parent=27 // pred_region
          %vm521 = vcmask 7168
          %522 = vst.msk [vmem:[%s221] sm:$0xff] %vm521, 0.0
          %523 = vst.msk [vmem:[%s221 + $0x8] sm:$0xff] %vm521, 0.0
          %vm524 = vcmask 0
          %525 = vst.msk [vmem:[%s221 + $0x10] sm:$0x1] %vm524, 0.0
        $region40: #{tpu_custom_call.1} parent=27 // pred_fallthru
          _
        %v526 = vld [vmem:[%s221] sm:$0xf]
        %v527 = vadd.f32 %v526, %v399
        %vm528 = vcmask 3072
        %529 = vst.msk [vmem:[%s221] sm:$0xf] %vm528, %v527
        %v530 = vld [vmem:[%s221 + $0x4] sm:$0xf]
        %v531 = vadd.f32 %v530, %v404
        %532 = vst.msk [vmem:[%s221 + $0x4] sm:$0xf] %vm528, %v531
        %v533 = vld [vmem:[%s221 + $0x8] sm:$0xf]
        %v534 = vadd.f32 %v533, %v411
        %535 = vst.msk [vmem:[%s221 + $0x8] sm:$0xf] %vm528, %v534
        %v536 = vld [vmem:[%s221 + $0xc] sm:$0x1]
        %v537 = vadd.f32 %v536, %v447
        %vm538 = vcmask 0
        %539 = vst.msk [vmem:[%s221 + $0xc] sm:$0x1] %vm538, %v537
        %v540 = vld [vmem:[%s221 + $0xd] sm:$0x1]
        %v541 = vadd.f32 %v540, %v450
        %542 = vst.msk [vmem:[%s221 + $0xd] sm:$0x1] %vm538, %v541
        %v543 = vld [vmem:[%s221 + $0xe] sm:$0x1]
        %v544 = vadd.f32 %v543, %v483
        %545 = vst.msk [vmem:[%s221 + $0xe] sm:$0x1] %vm538, %v544
        %v546 = vld [vmem:[%s221 + $0xf] sm:$0x1]
        %v547 = vadd.f32 %v546, %v499
        %548 = vst.msk [vmem:[%s221 + $0xf] sm:$0x1] %vm538, %v547
        %v549 = vld [vmem:[%s221 + $0x10] sm:$0x1]
        %v550 = vadd.f32 %v549, %v516
        %551 = vst.msk [vmem:[%s221 + $0x10] sm:$0x1] %vm538, %v550
        %p552 = scmp.lt.s32.totalorder %s23, 1
        %s553 = scalar_select %p552, %s23, 1
        %s554 = smul.addr %s553, 3
        %s555 = smul.addr %s554, 8
        %s556 = scalar_lea.vmem %s2, %s555
        // Predicated region
        $region41: #{tpu_custom_call.1} parent=27 // pred_check
          %p557 = pneg %p105
        $region42: #{tpu_custom_call.1} parent=27 // pred_check_branch
          %559 = sbr.rel (%p557) target = $region44
        $region43: #{tpu_custom_call.1} parent=27 // pred_region
          _
        $region44: #{tpu_custom_call.1} parent=27 // pred_fallthru
          _
      $region28: #{tpu_custom_call.1} parent=5 // pred_fallthru
        _
      %p560 = scmp.le.s32.totalorder 2, %s14
      // Predicated region
      $region45: #{tpu_custom_call.1} parent=5 // pred_check
        %p561 = pneg %p560
      $region46: #{tpu_custom_call.1} parent=5 // pred_check_branch
        %563 = sbr.rel (%p561) target = $region48
      $region47: #{tpu_custom_call.1} parent=5 // pred_region
        %s564 = ssub.s32 %s14, 2
        // Predicated region
        $region49: #{tpu_custom_call.1} parent=47 // pred_check
          %p565 = pneg %p111
        $region50: #{tpu_custom_call.1} parent=47 // pred_check_branch
          %567 = sbr.rel (%p565) target = $region52
        $region51: #{tpu_custom_call.1} parent=47 // pred_region
          %p568 = scmp.lt.s32.totalorder %s25, 1
          %s569 = scalar_select %p568, %s25, 1
          %s570 = smul.addr %s569, 3
          %s571 = smul.addr %s570, 8
          %s572 = scalar_lea.vmem %s2, %s571
        $region52: #{tpu_custom_call.1} parent=47 // pred_fallthru
          _
      $region48: #{tpu_custom_call.1} parent=5 // pred_fallthru
        _
    $region6: #{tpu_custom_call.1} parent=1 // loop_footer
      %s18 = sadd.s32 1, %s14
    $region7: #{tpu_custom_call.1} parent=1 // loop_footer_branch
      %13 = sbr.rel target = $region3
    $region8: #{tpu_custom_call.1} parent=1 // loop_exit
      _
    %573 = vsyncpa [#allocation3], 1
    %s574 = scalar_lea.sflag [#allocation3], 1
    %575 = vsyncpa %s574, 1
    %576 = vsyncpa [#allocation5], 1
    %s577 = scalar_lea.sflag [#allocation5], 1
    %578 = vsyncpa %s577, 1

</llo_original>
